<compile_context>
chip_gen: v7x
topology: tpu7x:2x2x1
jax: 0.10.0
libtpu: 0.0.40
codegen_flags: <defaults>
</compile_context>

<pallas_src>
import functools

import numpy as np
import jax
import jax.numpy as jnp
from jax import lax
from jax.experimental import pallas as pl
from jax.experimental.pallas import tpu as pltpu


# ---------------------------------------------------------------------------
# softplus(-z) = log1p(exp(-z)) for z in [0, 1], as a degree-7 polynomial in
# v = 2z - 1 (Chebyshev least-squares fit computed once at import time with
# numpy; max abs error ~1e-8, far below the 1e-5 test tolerance).
# ---------------------------------------------------------------------------
_V = np.linspace(-1.0, 1.0, 8193)
_CHEB = np.polynomial.chebyshev.chebfit(_V, np.log1p(np.exp(-0.5 * (_V + 1.0))), 7)
_SP_COEFFS = tuple(float(c) for c in np.polynomial.chebyshev.cheb2poly(_CHEB))


def _softplus_neg_unit(z):
    """log1p(exp(-z)) for z in [0, 1] -- VALU-only Horner evaluation."""
    v = 2.0 * z - 1.0
    p = _SP_COEFFS[-1] * v + _SP_COEFFS[-2]
    for c in _SP_COEFFS[-3::-1]:
        p = p * v + c
    return p


def _bce_sigmoid_kernel(x_ref, lbl_ref, out_ref, *,
                        n_rows, rows_blk, chunk_rows, lanes, mask_rows):
    """One grid step: reduce a (rows_blk, lanes) tile to an (8, 128) partial sum."""
    nchunks = rows_blk // chunk_rows
    base_row = pl.program_id(0) * rows_blk

    def chunk(c, acc):
        r0 = pl.multiple_of(c * chunk_rows, chunk_rows)
        x = x_ref[pl.ds(r0, chunk_rows), :]          # (chunk_rows, lanes) f32
        lbl = lbl_ref[pl.ds(r0, chunk_rows), :]      # (chunk_rows, lanes) f32

        # The module's "logits" are sigmoid(x); z in (0,1).
        z = jax.nn.sigmoid(x)                        # single EUP op per element
        sp = _softplus_neg_unit(z)                   # log1p(exp(-z)), pure VALU
        # Stable BCEWithLogits on z: max(z,0) - z*t + log1p(exp(-|z|)) == z*(1-t) + sp
        per = jnp.where(lbl > 0.0, sp, sp + z)       # target = (label > 0)
        per = jnp.where(lbl == 999.0, 0.0, per)      # weight = 0 on the 999 sentinel

        if mask_rows:
            # Tail grid block reads past the true row count: its out-of-bounds rows hold
            # unspecified data, so select (not multiply) them to exactly zero.
            row = base_row + r0 + lax.broadcasted_iota(jnp.int32, per.shape, 0)
            per = jnp.where(row < n_rows, per, 0.0)

        # Fold rows in 8-sublane groups (layout-free reshape, VPU adds) -> (8, lanes).
        rsum = jnp.sum(per.reshape(chunk_rows // 8, 8, lanes), axis=0)
        # Fold lane-tile groups -> (8, 128): pure single-vreg adds, keeps the per-block
        # output tiny and lane-dense regardless of C.
        part = rsum[:, 0:128]
        for g in range(1, lanes // 128):
            part = part + rsum[:, g * 128:(g + 1) * 128]
        return acc + part

    acc = lax.fori_loop(0, nchunks, chunk, jnp.zeros((8, 128), jnp.float32))
    out_ref[0] = acc


def _round_up(v, m):
    return -(-v // m) * m


def _round_down(v, m):
    return (v // m) * m


def bce_sigmoid(x, labels, size_average=False):
    """Pallas TPU implementation of BCE_sigmoid.forward. Returns a scalar float32."""
    assert x.shape == labels.shape
    N = x.shape[0]

    x2 = jnp.asarray(x, jnp.float32).reshape(N, -1)
    # Read labels directly as f32 in the kernel (no int16 repack pass). The 999 sentinel
    # and the >0 threshold are exact in float32.
    lbl2 = jnp.asarray(labels, jnp.float32).reshape(N, -1)

    R, C = x2.shape
    n_true = R * C                 # reduction='mean' divides by ALL elements

    LANES, SUB = 128, 8
    W = max(LANES, _round_up(C, LANES))

    # Pad only when actually needed (aligned shapes -> zero wrapper copies).
    col_pad = W - C
    row_pad = SUB - R if R < SUB else 0
    if col_pad or row_pad:
        # Padded labels are 999 -> weight 0 -> contribute nothing to the sum.
        x2 = jnp.pad(x2, ((0, row_pad), (0, col_pad)))
        lbl2 = jnp.pad(lbl2, ((0, row_pad), (0, col_pad)), constant_values=999.0)
    R_eff = R + row_pad

    # ---- block sizing --------------------------------------------------------------
    # Big DMA blocks (~4 MiB of f32 x per block) to amortize the fixed per-grid-step
    # cost; ~512 KiB compute chunks inside the kernel bound elementwise temporaries.
    # Footprint: 2 inputs x 2 pipeline buffers x 4 MiB + chunk temps ~= 20 MiB < 32 MiB.
    # TODO(synk): add a column grid axis for extremely wide C (8 rows x W already huge).
    TARGET_BLOCK_BYTES = 4 << 20
    TARGET_CHUNK_BYTES = 512 << 10

    chunk_rows = max(SUB, _round_down(TARGET_CHUNK_BYTES // (4 * W), SUB))
    chunk_rows = min(chunk_rows, _round_down(R_eff, SUB))
    rows_blk = max(chunk_rows, _round_down(TARGET_BLOCK_BYTES // (4 * W), chunk_rows))
    rows_blk = min(rows_blk, max(chunk_rows, _round_down(R_eff, chunk_rows)))
    # Keep >= 2 grid blocks when there is enough work so both v7x TensorCores get steps.
    rows_blk = min(rows_blk, max(chunk_rows, _round_up(_round_up(R_eff, 2) // 2, chunk_rows)))

    G = _round_up(R_eff, rows_blk) // rows_blk
    mask_rows = (R_eff % rows_blk) != 0

    kernel = functools.partial(
        _bce_sigmoid_kernel,
        n_rows=R_eff, rows_blk=rows_blk, chunk_rows=chunk_rows,
        lanes=W, mask_rows=mask_rows)

    cost = pl.CostEstimate(
        flops=30 * R_eff * W,
        transcendentals=2 * R_eff * W,
        bytes_accessed=8 * R_eff * W + 4 * G * 8 * 128,
    )

    partials = pl.pallas_call(
        kernel,
        out_shape=jax.ShapeDtypeStruct((G, 8, 128), jnp.float32),
        grid_spec=pltpu.PrefetchScalarGridSpec(
            num_scalar_prefetch=0,
            grid=(G,),
            in_specs=[
                # NOTE: pipeline_mode=pl.Buffered(3) is a cheap follow-up sweep once
                # measured; left at the default double-buffering here.
                pl.BlockSpec((rows_blk, W), lambda i: (i, 0)),
                pl.BlockSpec((rows_blk, W), lambda i: (i, 0)),
            ],
            out_specs=pl.BlockSpec((1, 8, 128), lambda i: (i, 0, 0)),
        ),
        compiler_params=pltpu.CompilerParams(
            dimension_semantics=("parallel",),
            vmem_limit_bytes=32 * 1024 * 1024,
        ),
        cost_estimate=cost,
    )(x2, lbl2)

    # Tiny epilogue: sum G*8*128 partials, divide by the TRUE element count.
    loss = jnp.sum(partials) / jnp.float32(n_true)
    if size_average:
        loss = loss / N
    return loss


def _reference(x, labels, size_average=False):
    # Pure-JAX mirror of the PyTorch module, for correctness checking.
    z = jax.nn.sigmoid(x.astype(jnp.float32))
    lbl = labels.astype(jnp.float32)
    w = (lbl != 999.0).astype(jnp.float32)
    t = (lbl > 0.0).astype(jnp.float32)
    per = jnp.maximum(z, 0.0) - z * t + jnp.log1p(jnp.exp(-jnp.abs(z)))
    loss = jnp.mean(per * w)
    if size_average:
        loss = loss / x.shape[0]
    return loss


if __name__ == "__main__":
    key = jax.random.PRNGKey(0)
    kx, kl, km = jax.random.split(key, 3)

    # (a) Lane-aligned multi-label setup: batch N=8, C=128 attributes (zero-copy path).
    N, C = 8, 128
    x = jax.random.normal(kx, (N, C), dtype=jnp.float32)
    labels = jax.random.randint(kl, (N, C), -1, 3).astype(jnp.float32)
    labels = jnp.where(jax.random.bernoulli(km, 0.1, (N, C)), 999.0, labels)
    loss = jax.block_until_ready(bce_sigmoid(x, labels, size_average=False))
    ref = _reference(x, labels, size_average=False)
    assert jnp.allclose(loss, ref, atol=1e-5, rtol=1e-5), (loss, ref)

    # (b) Ragged rows + multiple lane groups (exercises in-kernel row masking + lane fold).
    N2, C2 = 21, 384
    x_b = jax.random.normal(kx, (N2, C2), dtype=jnp.float32)
    labels_b = jax.random.randint(kl, (N2, C2), -1, 3).astype(jnp.float32)
    labels_b = jnp.where(jax.random.bernoulli(km, 0.1, (N2, C2)), 999.0, labels_b)
    loss_b = jax.block_until_ready(bce_sigmoid(x_b, labels_b, size_average=False))
    ref_b = _reference(x_b, labels_b, size_average=False)
    assert jnp.allclose(loss_b, ref_b, atol=1e-5, rtol=1e-5), (loss_b, ref_b)

    # (c) Tiny ragged case (column + row pad fallback path, size_average=True).
    N3, C3 = 5, 70
    x_c = jax.random.normal(kx, (N3, C3), dtype=jnp.float32)
    labels_c = jax.random.randint(kl, (N3, C3), -1, 3).astype(jnp.float32)
    labels_c = jnp.where(jax.random.bernoulli(km, 0.1, (N3, C3)), 999.0, labels_c)
    loss_c = jax.block_until_ready(bce_sigmoid(x_c, labels_c, size_average=True))
    ref_c = _reference(x_c, labels_c, size_average=True)
    assert jnp.allclose(loss_c, ref_c, atol=1e-5, rtol=1e-5), (loss_c, ref_c)

    print("KERNEL_OK")
</pallas_src>

<mosaic_0001>
module attributes {stable_mosaic.version = 11 : i64} {
  func.func @_bce_sigmoid_kernel(%arg0: i32, %arg1: memref<8x128xf32, #tpu.memory_space<vmem>>, %arg2: memref<8x128xf32, #tpu.memory_space<vmem>>, %arg3: memref<1x8x128xf32, #tpu.memory_space<vmem>>) attributes {dimension_semantics = [#tpu.dimension_semantics<parallel>], iteration_bounds = array<i64: 1>, scalar_prefetch = 0 : i64, scratch_operands = 0 : i64, tpu.core_type = #tpu.core_type<tc>, window_params = [{transform_indices = @transform_0, window_bounds = array<i64: 8, 128>}, {transform_indices = @transform_1, window_bounds = array<i64: 8, 128>}, {transform_indices = @transform_2, window_bounds = array<i64: 1, 8, 128>}]} {
    %cst = arith.constant 0.000000e+00 : f32
    %0 = vector.broadcast %cst : f32 to vector<8x128xf32>
    %c0_i32 = arith.constant 0 : i32
    %c8_i32 = arith.constant 8 : i32
    %1 = arith.muli %c0_i32, %c8_i32 : i32
    %2 = tpu.assume_multiple %1, 8 : i32
    %3 = arith.index_cast %2 : i32 to index
    %c0 = arith.constant 0 : index
    %4 = vector.load %arg1[%3, %c0] : memref<8x128xf32, #tpu.memory_space<vmem>>, vector<8x128xf32>
    %5 = arith.index_cast %2 : i32 to index
    %c0_0 = arith.constant 0 : index
    %6 = vector.load %arg2[%5, %c0_0] : memref<8x128xf32, #tpu.memory_space<vmem>>, vector<8x128xf32>
    %7 = arith.negf %4 : vector<8x128xf32>
    %8 = math.exp %7 : vector<8x128xf32>
    %cst_1 = arith.constant 1.000000e+00 : f32
    %9 = vector.broadcast %cst_1 : f32 to vector<8x128xf32>
    %10 = arith.addf %9, %8 : vector<8x128xf32>
    %11 = arith.divf %9, %10 : vector<8x128xf32>
    %cst_2 = arith.constant 2.000000e+00 : f32
    %12 = vector.broadcast %cst_2 : f32 to vector<8x128xf32>
    %13 = arith.mulf %12, %11 : vector<8x128xf32>
    %cst_3 = arith.constant 1.000000e+00 : f32
    %14 = vector.broadcast %cst_3 : f32 to vector<8x128xf32>
    %15 = arith.subf %13, %14 : vector<8x128xf32>
    %cst_4 = arith.constant -5.78558172E-7 : f32
    %16 = vector.broadcast %cst_4 : f32 to vector<8x128xf32>
    %17 = arith.mulf %16, %15 : vector<8x128xf32>
    %cst_5 = arith.constant 2.8903853E-6 : f32
    %18 = vector.broadcast %cst_5 : f32 to vector<8x128xf32>
    %19 = arith.addf %17, %18 : vector<8x128xf32>
    %20 = arith.mulf %19, %15 : vector<8x128xf32>
    %cst_6 = arith.constant 2.72618363E-5 : f32
    %21 = vector.broadcast %cst_6 : f32 to vector<8x128xf32>
    %22 = arith.addf %20, %21 : vector<8x128xf32>
    %23 = arith.mulf %22, %15 : vector<8x128xf32>
    %cst_7 = arith.constant -2.50898622E-4 : f32
    %24 = vector.broadcast %cst_7 : f32 to vector<8x128xf32>
    %25 = arith.addf %23, %24 : vector<8x128xf32>
    %26 = arith.mulf %25, %15 : vector<8x128xf32>
    %cst_8 = arith.constant -0.00119909516 : f32
    %27 = vector.broadcast %cst_8 : f32 to vector<8x128xf32>
    %28 = arith.addf %26, %27 : vector<8x128xf32>
    %29 = arith.mulf %28, %15 : vector<8x128xf32>
    %cst_9 = arith.constant 0.0293754581 : f32
    %30 = vector.broadcast %cst_9 : f32 to vector<8x128xf32>
    %31 = arith.addf %29, %30 : vector<8x128xf32>
    %32 = arith.mulf %31, %15 : vector<8x128xf32>
    %cst_10 = arith.constant -0.188770339 : f32
    %33 = vector.broadcast %cst_10 : f32 to vector<8x128xf32>
    %34 = arith.addf %32, %33 : vector<8x128xf32>
    %35 = arith.mulf %34, %15 : vector<8x128xf32>
    %cst_11 = arith.constant 4.740770e-01 : f32
    %36 = vector.broadcast %cst_11 : f32 to vector<8x128xf32>
    %37 = arith.addf %35, %36 : vector<8x128xf32>
    %cst_12 = arith.constant 0.000000e+00 : f32
    %38 = vector.broadcast %cst_12 : f32 to vector<8x128xf32>
    %39 = arith.cmpf ogt, %6, %38 : vector<8x128xf32>
    %40 = arith.addf %37, %11 : vector<8x128xf32>
    %41 = arith.select %39, %37, %40 : vector<8x128xi1>, vector<8x128xf32>
    %cst_13 = arith.constant 9.990000e+02 : f32
    %42 = vector.broadcast %cst_13 : f32 to vector<8x128xf32>
    %43 = arith.cmpf oeq, %6, %42 : vector<8x128xf32>
    %cst_14 = arith.constant 0.000000e+00 : f32
    %44 = vector.broadcast %cst_14 : f32 to vector<8x128xf32>
    %45 = arith.select %43, %44, %41 : vector<8x128xi1>, vector<8x128xf32>
    %46 = vector.shape_cast %45 : vector<8x128xf32> to vector<1x8x128xf32>
    %cst_15 = arith.constant dense<0.000000e+00> : vector<8x128xf32>
    %47 = vector.multi_reduction <add>, %46, %cst_15 [0] : vector<1x8x128xf32> to vector<8x128xf32>
    %48 = arith.addf %0, %47 : vector<8x128xf32>
    %c1_i32 = arith.constant 1 : i32
    %c0_16 = arith.constant 0 : index
    %c0_17 = arith.constant 0 : index
    %c0_18 = arith.constant 0 : index
    %49 = vector.load %arg3[%c0_16, %c0_17, %c0_18] : memref<1x8x128xf32, #tpu.memory_space<vmem>>, vector<1x8x128xf32>
    %50 = vector.shape_cast %49 : vector<1x8x128xf32> to vector<8x128xf32>
    %51 = vector.shape_cast %48 : vector<8x128xf32> to vector<1x8x128xf32>
    tpu.vector_store %arg3[%c0_16, %c0_17, %c0_18], %51 {strides = array<i32>} : memref<1x8x128xf32, #tpu.memory_space<vmem>>, vector<1x8x128xf32>,
    return
  }
  func.func @transform_0(%arg0: i32) -> (i32, i32) {
    %c0_i32 = arith.constant 0 : i32
    %c0_i32_0 = arith.constant 0 : i32
    return %arg0, %c0_i32 : i32, i32
  }
  func.func @transform_1(%arg0: i32) -> (i32, i32) {
    %c0_i32 = arith.constant 0 : i32
    %c0_i32_0 = arith.constant 0 : i32
    return %arg0, %c0_i32 : i32, i32
  }
  func.func @transform_2(%arg0: i32) -> (i32, i32, i32) {
    %c0_i32 = arith.constant 0 : i32
    %c0_i32_0 = arith.constant 0 : i32
    %c0_i32_1 = arith.constant 0 : i32
    return %arg0, %c0_i32, %c0_i32_0 : i32, i32, i32
  }
}

</mosaic_0001>

<llo_original>
// kernel: tpu_custom_call.1
$region0: #{tpu_custom_call.1}
  #allocation0 [shape = 'u32[]', space=smem, size = 0x4, offset = 0x4, fixed_abs, tag = 'smem constant byte address 0x4 - core index']
  #allocation1 [shape = 'u32[144,128]{1,0:T(1,128)}', space=vmem, size = 0x12000, scoped, tag = 'internal scratch']
  %s0 = inlined_call_operand.hbm [shape: f32[8,128], index: 0, kind: input, shape index: {}]
  %s1 = inlined_call_operand.hbm [shape: f32[8,128], index: 1, kind: input, shape index: {}]
  %s2 = inlined_call_operand.hbm [shape: f32[1,8,128], index: 2, kind: output, shape index: {}]
  %s3 = sld [smem:[#allocation0]]
  $region26: #{tpu_custom_call.1} parent=0
    _
  %s5 = ssub.s32 1, %s3
  %s6 = scalar_select 0, %s5, %s3
  $region1: #{tpu_custom_call.1} parent=0
    #allocation2 [shape = 'u8[4096]{0}', space=vmem, size = 0x1000, scoped, tag = 'input window, operand 0, single buffered']
    #allocation3 [shape = 's32[1]{0}', space=sflag, size = 0x4, scoped, tag = 'scoped memory for tpu_custom_call.1']
    #allocation4 [shape = 's32[1]{0}', space=sflag, size = 0x4, scoped, tag = 'scoped memory for tpu_custom_call.1']
    #allocation5 [shape = 'u8[4096]{0}', space=vmem, size = 0x1000, scoped, tag = 'input window, operand 1, single buffered']
    #allocation6 [shape = 's32[1]{0}', space=sflag, size = 0x4, scoped, tag = 'scoped memory for tpu_custom_call.1']
    #allocation7 [shape = 'u8[4096]{0}', space=vmem, size = 0x1000, scoped, tag = 'output window, operand 0, single buffered']
    %7 = vsyncpa [#allocation3], 0
    %8 = vsyncpa [#allocation6], 0
    %9 = vsyncpa [#allocation4], 0
    // Predicated region
    $region2: #{tpu_custom_call.1} parent=1 // pred_check
      _
    $region3: #{tpu_custom_call.1} parent=1 // pred_check_branch
      %11 = sbr.rel (0) target = $region5
    $region4: #{tpu_custom_call.1} parent=1 // pred_region
      %s13 = ssub.s32 128, 128
      %14 = vsyncadd [#allocation3], %s13
      %s16 = sshll.u32 [#allocation2], 4
      %s17 = int_to_ptr.vmem [resolvable:$true] %s16
      %19 = dma.hbm_to_vmem [thread:$0]  %s0, 128, %s17, [#allocation3]
    $region5: #{tpu_custom_call.1} parent=1 // pred_fallthru
      _
    // Predicated region
    $region6: #{tpu_custom_call.1} parent=1 // pred_check
      _
    $region7: #{tpu_custom_call.1} parent=1 // pred_check_branch
      %21 = sbr.rel (0) target = $region9
    $region8: #{tpu_custom_call.1} parent=1 // pred_region
      %s23 = ssub.s32 128, 128
      %24 = vsyncadd [#allocation6], %s23
      %s26 = sshll.u32 [#allocation5], 4
      %s27 = int_to_ptr.vmem [resolvable:$true] %s26
      %29 = dma.hbm_to_vmem [thread:$0]  %s1, 128, %s27, [#allocation6]
    $region9: #{tpu_custom_call.1} parent=1 // pred_fallthru
      _
    // Predicated region
    $region10: #{tpu_custom_call.1} parent=1 // pred_check
      _
    $region11: #{tpu_custom_call.1} parent=1 // pred_check_branch
      %31 = sbr.rel (0) target = $region13
    $region12: #{tpu_custom_call.1} parent=1 // pred_region
      %32 = dma.done [#allocation3], 128
    $region13: #{tpu_custom_call.1} parent=1 // pred_fallthru
      _
    // Predicated region
    $region14: #{tpu_custom_call.1} parent=1 // pred_check
      _
    $region15: #{tpu_custom_call.1} parent=1 // pred_check_branch
      %34 = sbr.rel (0) target = $region17
    $region16: #{tpu_custom_call.1} parent=1 // pred_region
      %35 = dma.done [#allocation6], 128
    $region17: #{tpu_custom_call.1} parent=1 // pred_fallthru
      _
    %v36 = vld [vmem:[#allocation2] sm:$0xff]
    %v37 = vld [vmem:[#allocation5] sm:$0xff]
    %v38 = vxor.u32 %v36, 2147483648
    %v39 = vmul.f32 %v38, 1.442695
    %v40 = vpow.pop %v39
    %v41 = vadd.f32 %v40, 1.0
    %v42 = vrcp.pop %v41
    %v43 = vmul.f32 1.0, %v42
    %v44 = vmul.f32 %v43, 2.0
    %v45 = vsub.f32 %v44, 1.0
    %v46 = vmul.f32 %v45, -5.785582e-07
    %v47 = vadd.f32 %v46, 2.8903853e-06
    %v48 = vmul.f32 %v47, %v45
    %v49 = vadd.f32 %v48, 2.7261836e-05
    %v50 = vmul.f32 %v49, %v45
    %v51 = vadd.f32 %v50, -0.00025089862
    %v52 = vmul.f32 %v51, %v45
    %v53 = vadd.f32 %v52, -0.0011990952
    %v54 = vmul.f32 %v53, %v45
    %v55 = vadd.f32 %v54, 0.029375458
    %v56 = vmul.f32 %v55, %v45
    %v57 = vadd.f32 %v56, -0.18877034
    %v58 = vmul.f32 %v57, %v45
    %v59 = vadd.f32 %v58, 0.474077
    %vm60 = vcmp.gt.f32.partialorder %v37, 0.0
    %v61 = vadd.f32 %v59, %v43
    %v62 = vsel %vm60, %v59, %v61
    %vm63 = vcmp.eq.f32.partialorder %v37, 999.0
    %v64 = vsel %vm63, 0.0, %v62
    %v65 = vadd.f32 %v64, 0.0
    %v66 = vadd.f32 %v65, 0.0
    %67 = vst [vmem:[#allocation7] sm:$0xff] %v66
    // Predicated region
    $region18: #{tpu_custom_call.1} parent=1 // pred_check
      _
    $region19: #{tpu_custom_call.1} parent=1 // pred_check_branch
      %69 = sbr.rel (0) target = $region21
    $region20: #{tpu_custom_call.1} parent=1 // pred_region
      %s71 = ssub.s32 128, 128
      %72 = vsyncadd [#allocation4], %s71
      %s74 = sshll.u32 [#allocation7], 4
      %s75 = int_to_ptr.vmem [resolvable:$true] %s74
      %77 = dma.vmem_to_hbm [thread:$0]  %s75, 128, %s2, [#allocation4]
    $region21: #{tpu_custom_call.1} parent=1 // pred_fallthru
      _
    // Predicated region
    $region22: #{tpu_custom_call.1} parent=1 // pred_check
      _
    $region23: #{tpu_custom_call.1} parent=1 // pred_check_branch
      %79 = sbr.rel (0) target = $region25
    $region24: #{tpu_custom_call.1} parent=1 // pred_region
      %80 = dma.done [#allocation4], 128
    $region25: #{tpu_custom_call.1} parent=1 // pred_fallthru
      _
    %81 = vsyncpa [#allocation3], 1
    %82 = vsyncpa [#allocation6], 1
    %83 = vsyncpa [#allocation4], 1

</llo_original>
